<compile_context>
chip_gen: v7x
topology: tpu7x:2x2x1
jax: 0.10.0
libtpu: 0.0.40
codegen_flags: <defaults>
</compile_context>

<pallas_src>
import functools

import jax
import jax.numpy as jnp
from jax.experimental import pallas as pl
from jax.experimental.pallas import tpu as pltpu


def _avg_pool3d_kernel(x_ref, m_ref, o_ref, dsum_ref, *,
                       kernel_size: int, stride: int, padding: int):
    # x_ref:    (bct, D, H*W)       lane-dense input block
    # m_ref:    (H*W, Ho*Wo)        kron(M_H, M_W) selection matrix, * 1/k^3
    # o_ref:    (bct, Do, Ho*Wo)    output block
    # dsum_ref: (bct, Do, H*W)      f32 scratch holding the D-window plane sums
    bct, D, HW = x_ref.shape
    _, Do, HoWo = o_ref.shape
    k, s, p = kernel_size, stride, padding

    # ---- Pass 1: clipped plane sums along D (f32 accumulation, pure VPU),
    #      written lane-dense (H*W wide) into the scratch. ----
    # TODO(synk): for very large Do, switch the interior windows to lax.fori_loop
    # to bound unroll size / vreg live ranges (edges handled separately).
    for od in range(Do):
        lo = max(od * s - p, 0)
        hi = min(od * s - p + k, D)
        sd = x_ref[:, lo, :].astype(jnp.float32)
        for d in range(lo + 1, hi):
            sd = sd + x_ref[:, d, :].astype(jnp.float32)
        dsum_ref[:, od, :] = sd

    # ---- Pass 2: fused H*W pooling as ONE batched MXU matmul (1/k^3 folded in),
    #      then a single full-block output store. ----
    res = jnp.dot(dsum_ref[...].reshape(bct * Do, HW), m_ref[...],
                  preferred_element_type=jnp.float32)            # (bct*Do, Ho*Wo)
    o_ref[...] = res.reshape(bct, Do, HoWo).astype(o_ref.dtype)


def _pick_bc_tile(BC, per_unit, fixed, budget):
    """Largest divisor of BC fitting the VMEM budget; prefer an even step count >= 2."""
    divs = [d for d in range(1, BC + 1) if BC % d == 0]
    fitting = [d for d in divs if d * per_unit + fixed <= budget]
    if not fitting:
        # TODO(synk): add a D-axis grid fallback when even a single (1, D, H*W)
        # volume exceeds the budget; for now rely on vmem_limit_bytes headroom.
        return 1
    even = [d for d in fitting if BC // d >= 2 and (BC // d) % 2 == 0]
    if even:
        return max(even)
    multi = [d for d in fitting if BC // d >= 2]
    if multi:
        return max(multi)
    return max(fitting)


def avg_pool3d_pallas(x: jnp.ndarray, kernel_size: int, stride: int | None = None,
                      padding: int = 0) -> jnp.ndarray:
    """x: (B, C, D, H, W). Returns (B, C, Do, Ho, Wo). count_include_pad=True."""
    if stride is None:
        stride = kernel_size
    k, s, p = kernel_size, stride, padding
    assert 2 * p <= k, "padding must be at most half the kernel size (torch rule)"

    B, C, D, H, W = x.shape
    Do = (D + 2 * p - k) // s + 1
    Ho = (H + 2 * p - k) // s + 1
    Wo = (W + 2 * p - k) // s + 1
    BC, HW, HoWo = B * C, H * W, Ho * Wo

    # Lane-dense input layout; free (HBM array is contiguous).
    xf = x.reshape(BC, D, HW)

    # 0/1 window-selection matrices for H and W, fused via Kronecker product,
    # with the 1/k^3 (count_include_pad=True) normalization folded in.
    def sel(n_in, n_out):
        i = jnp.arange(n_in)[:, None]
        o = jnp.arange(n_out)[None, :]
        start = o * s - p
        return ((i >= start) & (i < start + k)).astype(jnp.float32)

    m_hw = jnp.kron(sel(H, Ho), sel(W, Wo)) / float(k ** 3)      # (H*W, Ho*Wo)

    # ---- Per-generation VMEM budgeting / tile selection ----
    try:
        vmem_cap = int(pltpu.get_tpu_info().vmem_capacity_bytes)
    except Exception:
        vmem_cap = 64 * 1024 * 1024          # conservative default (v7x-sized)
    budget = (vmem_cap * 2) // 5             # ~51 MiB on 128 MiB parts, ~25 MiB on v7x

    itemsize = x.dtype.itemsize

    def rup(n, m):
        return ((n + m - 1) // m) * m

    per_unit = (rup(D, 8) * rup(HW, 128) * itemsize * 2          # input (double-buffered)
                + rup(Do, 8) * rup(HW, 128) * 4                  # f32 D-sum scratch
                + rup(Do, 8) * rup(HoWo, 128) * itemsize * 2)    # output (double-buffered)
    fixed = rup(HW, 8) * rup(HoWo, 128) * 4 * 2                  # resident selection matrix

    bc_tile = _pick_bc_tile(BC, per_unit, fixed, budget)
    n_steps = BC // bc_tile

    vmem_limit = min(vmem_cap - 8 * 1024 * 1024,
                     max(32 * 1024 * 1024,
                         bc_tile * per_unit + fixed + 16 * 1024 * 1024))

    kernel = functools.partial(_avg_pool3d_kernel,
                               kernel_size=k, stride=s, padding=p)

    out_flat = pl.pallas_call(
        kernel,
        out_shape=jax.ShapeDtypeStruct((BC, Do, HoWo), x.dtype),
        grid=(n_steps,),
        in_specs=[
            pl.BlockSpec((bc_tile, D, HW), lambda i: (i, 0, 0)),
            pl.BlockSpec((HW, HoWo), lambda i: (0, 0)),   # constant block: stays resident
        ],
        out_specs=pl.BlockSpec((bc_tile, Do, HoWo), lambda i: (i, 0, 0)),
        scratch_shapes=[pltpu.VMEM((bc_tile, Do, HW), jnp.float32)],
        compiler_params=pltpu.CompilerParams(
            dimension_semantics=("parallel",),
            vmem_limit_bytes=int(vmem_limit)),
    )(xf, m_hw)

    return out_flat.reshape(B, C, Do, Ho, Wo)


def _avg_pool3d_ref(x, kernel_size, stride, padding):
    """Pure-JAX reference (count_include_pad=True)."""
    B, C, D, H, W = x.shape
    k, s, p = kernel_size, stride, padding
    Do = (D + 2 * p - k) // s + 1
    Ho = (H + 2 * p - k) // s + 1
    Wo = (W + 2 * p - k) // s + 1
    xp = jnp.pad(x, ((0, 0), (0, 0), (p, p), (p, p), (p, p)))
    acc = jnp.zeros((B, C, Do, Ho, Wo), dtype=jnp.float32)
    for kd in range(k):
        for kh in range(k):
            for kw in range(k):
                acc = acc + xp[:, :,
                               kd:kd + (Do - 1) * s + 1:s,
                               kh:kh + (Ho - 1) * s + 1:s,
                               kw:kw + (Wo - 1) * s + 1:s]
    return (acc / float(k ** 3)).astype(x.dtype)


if __name__ == "__main__":
    kernel_size, stride, padding = 3, 2, 1
    B, C, D, H, W = 2, 4, 16, 16, 16

    key = jax.random.PRNGKey(0)
    x = jax.random.normal(key, (B, C, D, H, W), dtype=jnp.float32)

    out = avg_pool3d_pallas(x, kernel_size, stride, padding)
    out = jax.block_until_ready(out)

    ref = _avg_pool3d_ref(x, kernel_size, stride, padding)
    assert out.shape == ref.shape, (out.shape, ref.shape)
    max_err = float(jnp.max(jnp.abs(out - ref)))
    assert jnp.allclose(out, ref, atol=1e-5, rtol=1e-5), max_err

    print("KERNEL_OK")
</pallas_src>

<mosaic_0001>
module attributes {stable_mosaic.version = 11 : i64} {
  func.func @_avg_pool3d_kernel(%arg0: i32, %arg1: memref<4x16x256xf32, #tpu.memory_space<vmem>>, %arg2: memref<256x64xf32, #tpu.memory_space<vmem>>, %arg3: memref<4x8x64xf32, #tpu.memory_space<vmem>>, %arg4: memref<4x8x256xf32, #tpu.memory_space<vmem>>) attributes {dimension_semantics = [#tpu.dimension_semantics<parallel>], iteration_bounds = array<i64: 2>, scalar_prefetch = 0 : i64, scratch_operands = 1 : i64, tpu.core_type = #tpu.core_type<tc>, window_params = [{transform_indices = @transform_0, window_bounds = array<i64: 4, 16, 256>}, {pipeline_mode = #tpu.pipeline_mode<synchronous>, transform_indices = @transform_1, window_bounds = array<i64: 256, 64>}, {transform_indices = @transform_2, window_bounds = array<i64: 4, 8, 64>}]} {
    %c0 = arith.constant 0 : index
    %c0_0 = arith.constant 0 : index
    %c0_1 = arith.constant 0 : index
    %0 = vector.load %arg1[%c0, %c0_0, %c0_1] : memref<4x16x256xf32, #tpu.memory_space<vmem>>, vector<4x1x256xf32>
    %1 = vector.shape_cast %0 : vector<4x1x256xf32> to vector<4x256xf32>
    %c0_2 = arith.constant 0 : index
    %c1 = arith.constant 1 : index
    %c0_3 = arith.constant 0 : index
    %2 = vector.load %arg1[%c0_2, %c1, %c0_3] : memref<4x16x256xf32, #tpu.memory_space<vmem>>, vector<4x1x256xf32>
    %3 = vector.shape_cast %2 : vector<4x1x256xf32> to vector<4x256xf32>
    %4 = arith.addf %1, %3 : vector<4x256xf32>
    %c0_4 = arith.constant 0 : index
    %c0_5 = arith.constant 0 : index
    %c0_6 = arith.constant 0 : index
    %5 = vector.load %arg4[%c0_4, %c0_5, %c0_6] : memref<4x8x256xf32, #tpu.memory_space<vmem>>, vector<4x1x256xf32>
    %6 = vector.shape_cast %5 : vector<4x1x256xf32> to vector<4x256xf32>
    %7 = vector.shape_cast %4 : vector<4x256xf32> to vector<4x1x256xf32>
    tpu.vector_store %arg4[%c0_4, %c0_5, %c0_6], %7 {strides = array<i32>} : memref<4x8x256xf32, #tpu.memory_space<vmem>>, vector<4x1x256xf32>,
    %c0_7 = arith.constant 0 : index
    %c1_8 = arith.constant 1 : index
    %c0_9 = arith.constant 0 : index
    %8 = vector.load %arg1[%c0_7, %c1_8, %c0_9] : memref<4x16x256xf32, #tpu.memory_space<vmem>>, vector<4x1x256xf32>
    %9 = vector.shape_cast %8 : vector<4x1x256xf32> to vector<4x256xf32>
    %c0_10 = arith.constant 0 : index
    %c2 = arith.constant 2 : index
    %c0_11 = arith.constant 0 : index
    %10 = vector.load %arg1[%c0_10, %c2, %c0_11] : memref<4x16x256xf32, #tpu.memory_space<vmem>>, vector<4x1x256xf32>
    %11 = vector.shape_cast %10 : vector<4x1x256xf32> to vector<4x256xf32>
    %12 = arith.addf %9, %11 : vector<4x256xf32>
    %c0_12 = arith.constant 0 : index
    %c3 = arith.constant 3 : index
    %c0_13 = arith.constant 0 : index
    %13 = vector.load %arg1[%c0_12, %c3, %c0_13] : memref<4x16x256xf32, #tpu.memory_space<vmem>>, vector<4x1x256xf32>
    %14 = vector.shape_cast %13 : vector<4x1x256xf32> to vector<4x256xf32>
    %15 = arith.addf %12, %14 : vector<4x256xf32>
    %c0_14 = arith.constant 0 : index
    %c1_15 = arith.constant 1 : index
    %c0_16 = arith.constant 0 : index
    %16 = vector.load %arg4[%c0_14, %c1_15, %c0_16] : memref<4x8x256xf32, #tpu.memory_space<vmem>>, vector<4x1x256xf32>
    %17 = vector.shape_cast %16 : vector<4x1x256xf32> to vector<4x256xf32>
    %18 = vector.shape_cast %15 : vector<4x256xf32> to vector<4x1x256xf32>
    tpu.vector_store %arg4[%c0_14, %c1_15, %c0_16], %18 {strides = array<i32>} : memref<4x8x256xf32, #tpu.memory_space<vmem>>, vector<4x1x256xf32>,
    %c0_17 = arith.constant 0 : index
    %c3_18 = arith.constant 3 : index
    %c0_19 = arith.constant 0 : index
    %19 = vector.load %arg1[%c0_17, %c3_18, %c0_19] : memref<4x16x256xf32, #tpu.memory_space<vmem>>, vector<4x1x256xf32>
    %20 = vector.shape_cast %19 : vector<4x1x256xf32> to vector<4x256xf32>
    %c0_20 = arith.constant 0 : index
    %c4 = arith.constant 4 : index
    %c0_21 = arith.constant 0 : index
    %21 = vector.load %arg1[%c0_20, %c4, %c0_21] : memref<4x16x256xf32, #tpu.memory_space<vmem>>, vector<4x1x256xf32>
    %22 = vector.shape_cast %21 : vector<4x1x256xf32> to vector<4x256xf32>
    %23 = arith.addf %20, %22 : vector<4x256xf32>
    %c0_22 = arith.constant 0 : index
    %c5 = arith.constant 5 : index
    %c0_23 = arith.constant 0 : index
    %24 = vector.load %arg1[%c0_22, %c5, %c0_23] : memref<4x16x256xf32, #tpu.memory_space<vmem>>, vector<4x1x256xf32>
    %25 = vector.shape_cast %24 : vector<4x1x256xf32> to vector<4x256xf32>
    %26 = arith.addf %23, %25 : vector<4x256xf32>
    %c0_24 = arith.constant 0 : index
    %c2_25 = arith.constant 2 : index
    %c0_26 = arith.constant 0 : index
    %27 = vector.load %arg4[%c0_24, %c2_25, %c0_26] : memref<4x8x256xf32, #tpu.memory_space<vmem>>, vector<4x1x256xf32>
    %28 = vector.shape_cast %27 : vector<4x1x256xf32> to vector<4x256xf32>
    %29 = vector.shape_cast %26 : vector<4x256xf32> to vector<4x1x256xf32>
    tpu.vector_store %arg4[%c0_24, %c2_25, %c0_26], %29 {strides = array<i32>} : memref<4x8x256xf32, #tpu.memory_space<vmem>>, vector<4x1x256xf32>,
    %c0_27 = arith.constant 0 : index
    %c5_28 = arith.constant 5 : index
    %c0_29 = arith.constant 0 : index
    %30 = vector.load %arg1[%c0_27, %c5_28, %c0_29] : memref<4x16x256xf32, #tpu.memory_space<vmem>>, vector<4x1x256xf32>
    %31 = vector.shape_cast %30 : vector<4x1x256xf32> to vector<4x256xf32>
    %c0_30 = arith.constant 0 : index
    %c6 = arith.constant 6 : index
    %c0_31 = arith.constant 0 : index
    %32 = vector.load %arg1[%c0_30, %c6, %c0_31] : memref<4x16x256xf32, #tpu.memory_space<vmem>>, vector<4x1x256xf32>
    %33 = vector.shape_cast %32 : vector<4x1x256xf32> to vector<4x256xf32>
    %34 = arith.addf %31, %33 : vector<4x256xf32>
    %c0_32 = arith.constant 0 : index
    %c7 = arith.constant 7 : index
    %c0_33 = arith.constant 0 : index
    %35 = vector.load %arg1[%c0_32, %c7, %c0_33] : memref<4x16x256xf32, #tpu.memory_space<vmem>>, vector<4x1x256xf32>
    %36 = vector.shape_cast %35 : vector<4x1x256xf32> to vector<4x256xf32>
    %37 = arith.addf %34, %36 : vector<4x256xf32>
    %c0_34 = arith.constant 0 : index
    %c3_35 = arith.constant 3 : index
    %c0_36 = arith.constant 0 : index
    %38 = vector.load %arg4[%c0_34, %c3_35, %c0_36] : memref<4x8x256xf32, #tpu.memory_space<vmem>>, vector<4x1x256xf32>
    %39 = vector.shape_cast %38 : vector<4x1x256xf32> to vector<4x256xf32>
    %40 = vector.shape_cast %37 : vector<4x256xf32> to vector<4x1x256xf32>
    tpu.vector_store %arg4[%c0_34, %c3_35, %c0_36], %40 {strides = array<i32>} : memref<4x8x256xf32, #tpu.memory_space<vmem>>, vector<4x1x256xf32>,
    %c0_37 = arith.constant 0 : index
    %c7_38 = arith.constant 7 : index
    %c0_39 = arith.constant 0 : index
    %41 = vector.load %arg1[%c0_37, %c7_38, %c0_39] : memref<4x16x256xf32, #tpu.memory_space<vmem>>, vector<4x1x256xf32>
    %42 = vector.shape_cast %41 : vector<4x1x256xf32> to vector<4x256xf32>
    %c0_40 = arith.constant 0 : index
    %c8 = arith.constant 8 : index
    %c0_41 = arith.constant 0 : index
    %43 = vector.load %arg1[%c0_40, %c8, %c0_41] : memref<4x16x256xf32, #tpu.memory_space<vmem>>, vector<4x1x256xf32>
    %44 = vector.shape_cast %43 : vector<4x1x256xf32> to vector<4x256xf32>
    %45 = arith.addf %42, %44 : vector<4x256xf32>
    %c0_42 = arith.constant 0 : index
    %c9 = arith.constant 9 : index
    %c0_43 = arith.constant 0 : index
    %46 = vector.load %arg1[%c0_42, %c9, %c0_43] : memref<4x16x256xf32, #tpu.memory_space<vmem>>, vector<4x1x256xf32>
    %47 = vector.shape_cast %46 : vector<4x1x256xf32> to vector<4x256xf32>
    %48 = arith.addf %45, %47 : vector<4x256xf32>
    %c0_44 = arith.constant 0 : index
    %c4_45 = arith.constant 4 : index
    %c0_46 = arith.constant 0 : index
    %49 = vector.load %arg4[%c0_44, %c4_45, %c0_46] : memref<4x8x256xf32, #tpu.memory_space<vmem>>, vector<4x1x256xf32>
    %50 = vector.shape_cast %49 : vector<4x1x256xf32> to vector<4x256xf32>
    %51 = vector.shape_cast %48 : vector<4x256xf32> to vector<4x1x256xf32>
    tpu.vector_store %arg4[%c0_44, %c4_45, %c0_46], %51 {strides = array<i32>} : memref<4x8x256xf32, #tpu.memory_space<vmem>>, vector<4x1x256xf32>,
    %c0_47 = arith.constant 0 : index
    %c9_48 = arith.constant 9 : index
    %c0_49 = arith.constant 0 : index
    %52 = vector.load %arg1[%c0_47, %c9_48, %c0_49] : memref<4x16x256xf32, #tpu.memory_space<vmem>>, vector<4x1x256xf32>
    %53 = vector.shape_cast %52 : vector<4x1x256xf32> to vector<4x256xf32>
    %c0_50 = arith.constant 0 : index
    %c10 = arith.constant 10 : index
    %c0_51 = arith.constant 0 : index
    %54 = vector.load %arg1[%c0_50, %c10, %c0_51] : memref<4x16x256xf32, #tpu.memory_space<vmem>>, vector<4x1x256xf32>
    %55 = vector.shape_cast %54 : vector<4x1x256xf32> to vector<4x256xf32>
    %56 = arith.addf %53, %55 : vector<4x256xf32>
    %c0_52 = arith.constant 0 : index
    %c11 = arith.constant 11 : index
    %c0_53 = arith.constant 0 : index
    %57 = vector.load %arg1[%c0_52, %c11, %c0_53] : memref<4x16x256xf32, #tpu.memory_space<vmem>>, vector<4x1x256xf32>
    %58 = vector.shape_cast %57 : vector<4x1x256xf32> to vector<4x256xf32>
    %59 = arith.addf %56, %58 : vector<4x256xf32>
    %c0_54 = arith.constant 0 : index
    %c5_55 = arith.constant 5 : index
    %c0_56 = arith.constant 0 : index
    %60 = vector.load %arg4[%c0_54, %c5_55, %c0_56] : memref<4x8x256xf32, #tpu.memory_space<vmem>>, vector<4x1x256xf32>
    %61 = vector.shape_cast %60 : vector<4x1x256xf32> to vector<4x256xf32>
    %62 = vector.shape_cast %59 : vector<4x256xf32> to vector<4x1x256xf32>
    tpu.vector_store %arg4[%c0_54, %c5_55, %c0_56], %62 {strides = array<i32>} : memref<4x8x256xf32, #tpu.memory_space<vmem>>, vector<4x1x256xf32>,
    %c0_57 = arith.constant 0 : index
    %c11_58 = arith.constant 11 : index
    %c0_59 = arith.constant 0 : index
    %63 = vector.load %arg1[%c0_57, %c11_58, %c0_59] : memref<4x16x256xf32, #tpu.memory_space<vmem>>, vector<4x1x256xf32>
    %64 = vector.shape_cast %63 : vector<4x1x256xf32> to vector<4x256xf32>
    %c0_60 = arith.constant 0 : index
    %c12 = arith.constant 12 : index
    %c0_61 = arith.constant 0 : index
    %65 = vector.load %arg1[%c0_60, %c12, %c0_61] : memref<4x16x256xf32, #tpu.memory_space<vmem>>, vector<4x1x256xf32>
    %66 = vector.shape_cast %65 : vector<4x1x256xf32> to vector<4x256xf32>
    %67 = arith.addf %64, %66 : vector<4x256xf32>
    %c0_62 = arith.constant 0 : index
    %c13 = arith.constant 13 : index
    %c0_63 = arith.constant 0 : index
    %68 = vector.load %arg1[%c0_62, %c13, %c0_63] : memref<4x16x256xf32, #tpu.memory_space<vmem>>, vector<4x1x256xf32>
    %69 = vector.shape_cast %68 : vector<4x1x256xf32> to vector<4x256xf32>
    %70 = arith.addf %67, %69 : vector<4x256xf32>
    %c0_64 = arith.constant 0 : index
    %c6_65 = arith.constant 6 : index
    %c0_66 = arith.constant 0 : index
    %71 = vector.load %arg4[%c0_64, %c6_65, %c0_66] : memref<4x8x256xf32, #tpu.memory_space<vmem>>, vector<4x1x256xf32>
    %72 = vector.shape_cast %71 : vector<4x1x256xf32> to vector<4x256xf32>
    %73 = vector.shape_cast %70 : vector<4x256xf32> to vector<4x1x256xf32>
    tpu.vector_store %arg4[%c0_64, %c6_65, %c0_66], %73 {strides = array<i32>} : memref<4x8x256xf32, #tpu.memory_space<vmem>>, vector<4x1x256xf32>,
    %c0_67 = arith.constant 0 : index
    %c13_68 = arith.constant 13 : index
    %c0_69 = arith.constant 0 : index
    %74 = vector.load %arg1[%c0_67, %c13_68, %c0_69] : memref<4x16x256xf32, #tpu.memory_space<vmem>>, vector<4x1x256xf32>
    %75 = vector.shape_cast %74 : vector<4x1x256xf32> to vector<4x256xf32>
    %c0_70 = arith.constant 0 : index
    %c14 = arith.constant 14 : index
    %c0_71 = arith.constant 0 : index
    %76 = vector.load %arg1[%c0_70, %c14, %c0_71] : memref<4x16x256xf32, #tpu.memory_space<vmem>>, vector<4x1x256xf32>
    %77 = vector.shape_cast %76 : vector<4x1x256xf32> to vector<4x256xf32>
    %78 = arith.addf %75, %77 : vector<4x256xf32>
    %c0_72 = arith.constant 0 : index
    %c15 = arith.constant 15 : index
    %c0_73 = arith.constant 0 : index
    %79 = vector.load %arg1[%c0_72, %c15, %c0_73] : memref<4x16x256xf32, #tpu.memory_space<vmem>>, vector<4x1x256xf32>
    %80 = vector.shape_cast %79 : vector<4x1x256xf32> to vector<4x256xf32>
    %81 = arith.addf %78, %80 : vector<4x256xf32>
    %c0_74 = arith.constant 0 : index
    %c7_75 = arith.constant 7 : index
    %c0_76 = arith.constant 0 : index
    %82 = vector.load %arg4[%c0_74, %c7_75, %c0_76] : memref<4x8x256xf32, #tpu.memory_space<vmem>>, vector<4x1x256xf32>
    %83 = vector.shape_cast %82 : vector<4x1x256xf32> to vector<4x256xf32>
    %84 = vector.shape_cast %81 : vector<4x256xf32> to vector<4x1x256xf32>
    tpu.vector_store %arg4[%c0_74, %c7_75, %c0_76], %84 {strides = array<i32>} : memref<4x8x256xf32, #tpu.memory_space<vmem>>, vector<4x1x256xf32>,
    %c0_77 = arith.constant 0 : index
    %c0_78 = arith.constant 0 : index
    %c0_79 = arith.constant 0 : index
    %85 = vector.load %arg4[%c0_77, %c0_78, %c0_79] : memref<4x8x256xf32, #tpu.memory_space<vmem>>, vector<4x8x256xf32>
    %86 = vector.shape_cast %85 : vector<4x8x256xf32> to vector<32x256xf32>
    %c0_80 = arith.constant 0 : index
    %c0_81 = arith.constant 0 : index
    %87 = vector.load %arg2[%c0_80, %c0_81] : memref<256x64xf32, #tpu.memory_space<vmem>>, vector<256x64xf32>
    %cst = arith.constant dense<0.000000e+00> : vector<32x64xf32>
    %88 = tpu.matmul %86, %87, %cst {dimension_numbers = #tpu.dot_dimension_numbers<[1], [0], [0], [1], [0, 0, 1, 1], [], []>} : vector<32x256xf32>, vector<256x64xf32>, vector<32x64xf32> -> vector<32x64xf32>
    %89 = vector.shape_cast %88 : vector<32x64xf32> to vector<4x8x64xf32>
    %c0_82 = arith.constant 0 : index
    %c0_83 = arith.constant 0 : index
    %c0_84 = arith.constant 0 : index
    %90 = vector.load %arg3[%c0_82, %c0_83, %c0_84] : memref<4x8x64xf32, #tpu.memory_space<vmem>>, vector<4x8x64xf32>
    tpu.vector_store %arg3[%c0_82, %c0_83, %c0_84], %89 {strides = array<i32>} : memref<4x8x64xf32, #tpu.memory_space<vmem>>, vector<4x8x64xf32>,
    return
  }
  func.func @transform_0(%arg0: i32) -> (i32, i32, i32) {
    %c0_i32 = arith.constant 0 : i32
    %c0_i32_0 = arith.constant 0 : i32
    %c0_i32_1 = arith.constant 0 : i32
    return %arg0, %c0_i32, %c0_i32_0 : i32, i32, i32
  }
  func.func @transform_1(%arg0: i32) -> (i32, i32) {
    %c0_i32 = arith.constant 0 : i32
    %c0_i32_0 = arith.constant 0 : i32
    %c0_i32_1 = arith.constant 0 : i32
    return %c0_i32, %c0_i32_0 : i32, i32
  }
  func.func @transform_2(%arg0: i32) -> (i32, i32, i32) {
    %c0_i32 = arith.constant 0 : i32
    %c0_i32_0 = arith.constant 0 : i32
    %c0_i32_1 = arith.constant 0 : i32
    return %arg0, %c0_i32, %c0_i32_0 : i32, i32, i32
  }
}

</mosaic_0001>

<llo_original>
// kernel: tpu_custom_call.1
$region0: #{tpu_custom_call.1}
  #allocation0 [shape = 'u32[]', space=smem, size = 0x4, offset = 0x4, fixed_abs, tag = 'smem constant byte address 0x4 - core index']
  #allocation1 [shape = 'u32[144,128]{1,0:T(1,128)}', space=vmem, size = 0x12000, scoped, tag = 'internal scratch']
  #allocation2 [shape = 'f32[4,8,256]{2,1,0:T(8,128)}', space=vmem, size = 0x8000, scoped, tag = 'scratch operand']
  %s0 = inlined_call_operand.vmem [shape: f32[8,16,256], index: 0, kind: input, shape index: {}]
  %s1 = inlined_call_operand.vmem [shape: f32[256,64], index: 1, kind: input, shape index: {}]
  %s2 = inlined_call_operand.hbm [shape: f32[8,8,64], index: 2, kind: output, shape index: {}]
  %s3 = sld [smem:[#allocation0]]
  $region41: #{tpu_custom_call.1} parent=0
    _
  %s5 = ssub.s32 1, %s3
  %s6 = scalar_select 0, %s5, %s3
  $region1: #{tpu_custom_call.1} parent=0
    #allocation3 [shape = 'u8[32768]{0}', space=vmem, size = 0x8000, scoped, tag = 'output window, operand 0']
    #allocation4 [shape = 's32[2]{0}', space=sflag, size = 0x8, scoped, tag = 'scoped memory for tpu_custom_call.1']
    %7 = vsyncpa [#allocation4], 0
    %s8 = scalar_lea.sflag [#allocation4], 1
    %9 = vsyncpa %s8, 0
    loop: start=0, step=1, limit=4
    $region2: #{tpu_custom_call.1} parent=1 // loop_pre_header
      _
    $region3: #{tpu_custom_call.1} parent=1 // loop_header
      %s11 = sphi 0, %s15
      %p12 = scmp.ge.s32.totalorder %s11, 4
      %s21 = sphi 0, %s23
      %s24 = sphi 0, %s21
      %s25 = sphi 0, %s24
      %s41 = sphi 0, %s25
      %s45 = sphi 0, %s45
      %s47 = sphi 0, %s45
      %s48 = sphi 0, %s47
      %s62 = sphi 0, %s48
      %s68 = sphi 0, %s70
      %s71 = sphi 0, %s68
      %s72 = sphi 0, %s71
      %s88 = sphi 0, %s72
    $region4: #{tpu_custom_call.1} parent=1 // loop_header_branch
      %14 = sbr.rel (%p12) target = $region8
    $region5: #{tpu_custom_call.1} parent=1 // loop_body
      %s16 = ssub.s32 %s11, 1
      %s17 = ssub.s32 %s11, 2
      %s18 = sadd.s32 %s11, 1
      %s19 = ssub.s32 %s11, %s18
      %p20 = scmp.eq.s32.totalorder %s19, 0
      %s22 = sadd.s32 %s21, 1
      %s23 = scalar_select %p20, %s21, %s22
      %p26 = pneg %p20
      %p27 = scmp.eq.s32.totalorder %s11, 1
      %p28 = por %p26, %p27
      %p29 = scmp.ne.s32.totalorder %s21, %s24
      %p30 = scmp.eq.s32.totalorder %s11, 0
      %p31 = por %p29, %p30
      %p32 = scmp.ne.s32.totalorder %s21, %s24
      %p33 = scmp.eq.s32.totalorder %s16, 1
      %p34 = por %p32, %p33
      %p35 = scmp.ne.s32.totalorder %s24, %s25
      %p36 = scmp.eq.s32.totalorder %s16, 0
      %p37 = por %p35, %p36
      %p38 = scmp.ne.s32.totalorder %s24, %s25
      %p39 = scmp.eq.s32.totalorder %s17, 1
      %p40 = por %p38, %p39
      %p42 = scmp.ne.s32.totalorder %s25, %s41
      %p43 = scmp.eq.s32.totalorder %s17, 0
      %p44 = por %p42, %p43
      %s46 = sadd.s32 %s45, 1
      %p49 = scmp.eq.s32.totalorder %s11, 1
      %p50 = scmp.ne.s32.totalorder %s45, %s47
      %p51 = scmp.eq.s32.totalorder %s11, 0
      %p52 = por %p50, %p51
      %p53 = scmp.ne.s32.totalorder %s45, %s47
      %p54 = scmp.eq.s32.totalorder %s16, 1
      %p55 = por %p53, %p54
      %p56 = scmp.ne.s32.totalorder %s47, %s48
      %p57 = scmp.eq.s32.totalorder %s16, 0
      %p58 = por %p56, %p57
      %p59 = scmp.ne.s32.totalorder %s47, %s48
      %p60 = scmp.eq.s32.totalorder %s17, 1
      %p61 = por %p59, %p60
      %p63 = scmp.ne.s32.totalorder %s48, %s62
      %p64 = scmp.eq.s32.totalorder %s17, 0
      %p65 = por %p63, %p64
      %s66 = ssub.s32 %s11, %s18
      %p67 = scmp.eq.s32.totalorder %s66, 0
      %s69 = sadd.s32 %s68, 1
      %s70 = scalar_select %p67, %s68, %s69
      %p73 = pneg %p67
      %p74 = scmp.eq.s32.totalorder %s11, 1
      %p75 = por %p73, %p74
      %p76 = scmp.ne.s32.totalorder %s68, %s71
      %p77 = scmp.eq.s32.totalorder %s11, 0
      %p78 = por %p76, %p77
      %p79 = scmp.ne.s32.totalorder %s68, %s71
      %p80 = scmp.eq.s32.totalorder %s16, 1
      %p81 = por %p79, %p80
      %p82 = scmp.ne.s32.totalorder %s71, %s72
      %p83 = scmp.eq.s32.totalorder %s16, 0
      %p84 = por %p82, %p83
      %p85 = scmp.ne.s32.totalorder %s71, %s72
      %p86 = scmp.eq.s32.totalorder %s17, 1
      %p87 = por %p85, %p86
      %p89 = scmp.ne.s32.totalorder %s72, %s88
      %p90 = scmp.eq.s32.totalorder %s17, 0
      %p91 = por %p89, %p90
      %p92 = scmp.le.s32.totalorder 1, %s11
      %p93 = scmp.lt.s32.totalorder %s11, 3
      %p94 = pnand %p92, %p93
      %p95 = pneg %p94
      // Predicated region
      $region9: #{tpu_custom_call.1} parent=5 // pred_check
        _
      $region10: #{tpu_custom_call.1} parent=5 // pred_check_branch
        %97 = sbr.rel (%p94) target = $region12
      $region11: #{tpu_custom_call.1} parent=5 // pred_region
        %s98 = ssub.s32 %s11, 1
        // Predicated region
        $region13: #{tpu_custom_call.1} parent=11 // pred_check
          %p99 = pneg %p58
        $region14: #{tpu_custom_call.1} parent=11 // pred_check_branch
          %101 = sbr.rel (%p99) target = $region16
        $region15: #{tpu_custom_call.1} parent=11 // pred_region
          _
        $region16: #{tpu_custom_call.1} parent=11 // pred_fallthru
          _
      $region12: #{tpu_custom_call.1} parent=5 // pred_fallthru
        _
      %p102 = scmp.lt.s32.totalorder %s11, 2
      // Predicated region
      $region17: #{tpu_custom_call.1} parent=5 // pred_check
        %p103 = pneg %p102
      $region18: #{tpu_custom_call.1} parent=5 // pred_check_branch
        %105 = sbr.rel (%p103) target = $region20
      $region19: #{tpu_custom_call.1} parent=5 // pred_region
        // Predicated region
        $region21: #{tpu_custom_call.1} parent=19 // pred_check
          %p106 = pneg %p31
        $region22: #{tpu_custom_call.1} parent=19 // pred_check_branch
          %108 = sbr.rel (%p106) target = $region24
        $region23: #{tpu_custom_call.1} parent=19 // pred_region
          %s109 = smul.u32 4, %s11
          %p110 = scmp.lt.s32.totalorder %s109, 7
          %s111 = scalar_select %p110, %s109, 7
          %s112 = smul.addr %s111, 4
          %s113 = smul.addr %s112, 8
          %s114 = scalar_lea.vmem %s0, %s113
          %s115 = smul.u32 4, %s11
        $region24: #{tpu_custom_call.1} parent=19 // pred_fallthru
          _
      $region20: #{tpu_custom_call.1} parent=5 // pred_fallthru
        _
      %p116 = scmp.le.s32.totalorder 1, %s11
      %p117 = scmp.lt.s32.totalorder %s11, 3
      %p118 = pnand %p116, %p117
      %p119 = pneg %p118
      // Predicated region
      $region25: #{tpu_custom_call.1} parent=5 // pred_check
        _
      $region26: #{tpu_custom_call.1} parent=5 // pred_check_branch
        %121 = sbr.rel (%p118) target = $region28
      $region27: #{tpu_custom_call.1} parent=5 // pred_region
        %s122 = ssub.s32 %s11, 1
        %s123 = smul.u32 4, %s16
        %p124 = scmp.lt.s32.totalorder %s123, 7
        %s125 = scalar_select %p124, %s123, 7
        %s126 = smul.addr %s125, 4
        %s127 = smul.addr %s126, 8
        %s128 = scalar_lea.vmem %s0, %s127
        %p129 = pneg %p37
        %p130 = pneg %p34
        %p131 = pneg %p58
        %p132 = pneg %p55
        %p133 = pneg %p84
        %p134 = pneg %p81
        %s135 = sand.u32 %s71, 1
        %s136 = scalar_lea.sflag [#allocation4], %s135
        %s137 = sand.u32 %s71, 1
        %s138 = smul.addr %s137, 32
        %s139 = scalar_lea.vmem [#allocation3], %s138
        %s140 = smul.u32 4, %s16
        %p141 = scmp.lt.s32.totalorder %s140, 7
        %s142 = scalar_select %p141, %s140, 7
        %s143 = smul.addr %s142, 4
        %s144 = smul.addr %s143, 8
        %s145 = scalar_lea.vmem %s0, %s144
        %s146 = smul.u32 4, %s16
        %s147 = smul.u32 4, %s16
        %v148 = vld [vmem:[%s145] ss:$8 sm:$0x3]
        %s149 = scalar_lea.vmem %s145, 32
        %v150 = vld [vmem:[%s149] ss:$8 sm:$0x3]
        %s151 = scalar_lea.vmem %s145, 64
        %v152 = vld [vmem:[%s151] ss:$8 sm:$0x3]
        %s153 = scalar_lea.vmem %s145, 96
        %v154 = vld [vmem:[%s153] ss:$8 sm:$0x3]
        %s155 = scalar_lea.vmem %s145, 1
        %v156 = vld [vmem:[%s155] ss:$8 sm:$0x3]
        %s157 = scalar_lea.vmem %s145, 33
        %v158 = vld [vmem:[%s157] ss:$8 sm:$0x3]
        %s159 = scalar_lea.vmem %s145, 65
        %v160 = vld [vmem:[%s159] ss:$8 sm:$0x3]
        %s161 = scalar_lea.vmem %s145, 97
        %v162 = vld [vmem:[%s161] ss:$8 sm:$0x3]
        %v163 = vadd.f32 %v148, %v156
        %v164 = vadd.f32 %v150, %v158
        %v165 = vadd.f32 %v152, %v160
        %v166 = vadd.f32 %v154, %v162
        %v167 = vlaneseq
        %vm168 = vcmp.ge.s32.totalorder %v167, 0
        %vm169 = vcmp.lt.s32.totalorder %v167, 256
        %vm170 = vmand %vm168, %vm169
        %171 = vst.msk [vmem:[#allocation2] ss:$8 sm:$0x3] %vm170, %v163
        %172 = vst.msk [vmem:[#allocation2] ss:$8 sm:$0x0] %vm170, %v163
        %s173 = scalar_lea.vmem [#allocation2], 16
        %174 = vst.msk [vmem:[%s173] ss:$8 sm:$0x3] %vm170, %v164
        %175 = vst.msk [vmem:[%s173] ss:$8 sm:$0x0] %vm170, %v164
        %s176 = scalar_lea.vmem [#allocation2], 32
        %177 = vst.msk [vmem:[%s176] ss:$8 sm:$0x3] %vm170, %v165
        %178 = vst.msk [vmem:[%s176] ss:$8 sm:$0x0] %vm170, %v165
        %s179 = scalar_lea.vmem [#allocation2], 48
        %180 = vst.msk [vmem:[%s179] ss:$8 sm:$0x3] %vm170, %v166
        %181 = vst.msk [vmem:[%s179] ss:$8 sm:$0x0] %vm170, %v166
        %v182 = vld [vmem:[%s155] ss:$8 sm:$0x3]
        %v183 = vld [vmem:[%s157] ss:$8 sm:$0x3]
        %v184 = vld [vmem:[%s159] ss:$8 sm:$0x3]
        %v185 = vld [vmem:[%s161] ss:$8 sm:$0x3]
        %s186 = scalar_lea.vmem %s145, 2
        %v187 = vld [vmem:[%s186] ss:$8 sm:$0x3]
        %s188 = scalar_lea.vmem %s145, 34
        %v189 = vld [vmem:[%s188] ss:$8 sm:$0x3]
        %s190 = scalar_lea.vmem %s145, 66
        %v191 = vld [vmem:[%s190] ss:$8 sm:$0x3]
        %s192 = scalar_lea.vmem %s145, 98
        %v193 = vld [vmem:[%s192] ss:$8 sm:$0x3]
        %v194 = vadd.f32 %v182, %v187
        %v195 = vadd.f32 %v183, %v189
        %v196 = vadd.f32 %v184, %v191
        %v197 = vadd.f32 %v185, %v193
        %s198 = scalar_lea.vmem %s145, 3
        %v199 = vld [vmem:[%s198] ss:$8 sm:$0x3]
        %s200 = scalar_lea.vmem %s145, 35
        %v201 = vld [vmem:[%s200] ss:$8 sm:$0x3]
        %s202 = scalar_lea.vmem %s145, 67
        %v203 = vld [vmem:[%s202] ss:$8 sm:$0x3]
        %s204 = scalar_lea.vmem %s145, 99
        %v205 = vld [vmem:[%s204] ss:$8 sm:$0x3]
        %v206 = vadd.f32 %v194, %v199
        %v207 = vadd.f32 %v195, %v201
        %v208 = vadd.f32 %v196, %v203
        %v209 = vadd.f32 %v197, %v205
        %s210 = scalar_lea.vmem [#allocation2], 1
        %211 = vst.msk [vmem:[%s210] ss:$8 sm:$0x3] %vm170, %v206
        %212 = vst.msk [vmem:[%s210] ss:$8 sm:$0x0] %vm170, %v206
        %s213 = scalar_lea.vmem [#allocation2], 17
        %214 = vst.msk [vmem:[%s213] ss:$8 sm:$0x3] %vm170, %v207
        %215 = vst.msk [vmem:[%s213] ss:$8 sm:$0x0] %vm170, %v207
        %s216 = scalar_lea.vmem [#allocation2], 33
        %217 = vst.msk [vmem:[%s216] ss:$8 sm:$0x3] %vm170, %v208
        %218 = vst.msk [vmem:[%s216] ss:$8 sm:$0x0] %vm170, %v208
        %s219 = scalar_lea.vmem [#allocation2], 49
        %220 = vst.msk [vmem:[%s219] ss:$8 sm:$0x3] %vm170, %v209
        %221 = vst.msk [vmem:[%s219] ss:$8 sm:$0x0] %vm170, %v209
        %v222 = vld [vmem:[%s198] ss:$8 sm:$0x3]
        %v223 = vld [vmem:[%s200] ss:$8 sm:$0x3]
        %v224 = vld [vmem:[%s202] ss:$8 sm:$0x3]
        %v225 = vld [vmem:[%s204] ss:$8 sm:$0x3]
        %s226 = scalar_lea.vmem %s145, 4
        %v227 = vld [vmem:[%s226] ss:$8 sm:$0x3]
        %s228 = scalar_lea.vmem %s145, 36
        %v229 = vld [vmem:[%s228] ss:$8 sm:$0x3]
        %s230 = scalar_lea.vmem %s145, 68
        %v231 = vld [vmem:[%s230] ss:$8 sm:$0x3]
        %s232 = scalar_lea.vmem %s145, 100
        %v233 = vld [vmem:[%s232] ss:$8 sm:$0x3]
        %v234 = vadd.f32 %v222, %v227
        %v235 = vadd.f32 %v223, %v229
        %v236 = vadd.f32 %v224, %v231
        %v237 = vadd.f32 %v225, %v233
        %s238 = scalar_lea.vmem %s145, 5
        %v239 = vld [vmem:[%s238] ss:$8 sm:$0x3]
        %s240 = scalar_lea.vmem %s145, 37
        %v241 = vld [vmem:[%s240] ss:$8 sm:$0x3]
        %s242 = scalar_lea.vmem %s145, 69
        %v243 = vld [vmem:[%s242] ss:$8 sm:$0x3]
        %s244 = scalar_lea.vmem %s145, 101
        %v245 = vld [vmem:[%s244] ss:$8 sm:$0x3]
        %v246 = vadd.f32 %v234, %v239
        %v247 = vadd.f32 %v235, %v241
        %v248 = vadd.f32 %v236, %v243
        %v249 = vadd.f32 %v237, %v245
        %s250 = scalar_lea.vmem [#allocation2], 2
        %251 = vst.msk [vmem:[%s250] ss:$8 sm:$0x3] %vm170, %v246
        %252 = vst.msk [vmem:[%s250] ss:$8 sm:$0x0] %vm170, %v246
        %s253 = scalar_lea.vmem [#allocation2], 18
        %254 = vst.msk [vmem:[%s253] ss:$8 sm:$0x3] %vm170, %v247
        %255 = vst.msk [vmem:[%s253] ss:$8 sm:$0x0] %vm170, %v247
        %s256 = scalar_lea.vmem [#allocation2], 34
        %257 = vst.msk [vmem:[%s256] ss:$8 sm:$0x3] %vm170, %v248
        %258 = vst.msk [vmem:[%s256] ss:$8 sm:$0x0] %vm170, %v248
        %s259 = scalar_lea.vmem [#allocation2], 50
        %260 = vst.msk [vmem:[%s259] ss:$8 sm:$0x3] %vm170, %v249
        %261 = vst.msk [vmem:[%s259] ss:$8 sm:$0x0] %vm170, %v249
        %v262 = vld [vmem:[%s238] ss:$8 sm:$0x3]
        %v263 = vld [vmem:[%s240] ss:$8 sm:$0x3]
        %v264 = vld [vmem:[%s242] ss:$8 sm:$0x3]
        %v265 = vld [vmem:[%s244] ss:$8 sm:$0x3]
        %s266 = scalar_lea.vmem %s145, 6
        %v267 = vld [vmem:[%s266] ss:$8 sm:$0x3]
        %s268 = scalar_lea.vmem %s145, 38
        %v269 = vld [vmem:[%s268] ss:$8 sm:$0x3]
        %s270 = scalar_lea.vmem %s145, 70
        %v271 = vld [vmem:[%s270] ss:$8 sm:$0x3]
        %s272 = scalar_lea.vmem %s145, 102
        %v273 = vld [vmem:[%s272] ss:$8 sm:$0x3]
        %v274 = vadd.f32 %v262, %v267
        %v275 = vadd.f32 %v263, %v269
        %v276 = vadd.f32 %v264, %v271
        %v277 = vadd.f32 %v265, %v273
        %s278 = scalar_lea.vmem %s145, 7
        %v279 = vld [vmem:[%s278] ss:$8 sm:$0x3]
        %s280 = scalar_lea.vmem %s145, 39
        %v281 = vld [vmem:[%s280] ss:$8 sm:$0x3]
        %s282 = scalar_lea.vmem %s145, 71
        %v283 = vld [vmem:[%s282] ss:$8 sm:$0x3]
        %s284 = scalar_lea.vmem %s145, 103
        %v285 = vld [vmem:[%s284] ss:$8 sm:$0x3]
        %v286 = vadd.f32 %v274, %v279
        %v287 = vadd.f32 %v275, %v281
        %v288 = vadd.f32 %v276, %v283
        %v289 = vadd.f32 %v277, %v285
        %s290 = scalar_lea.vmem [#allocation2], 3
        %291 = vst.msk [vmem:[%s290] ss:$8 sm:$0x3] %vm170, %v286
        %292 = vst.msk [vmem:[%s290] ss:$8 sm:$0x0] %vm170, %v286
        %s293 = scalar_lea.vmem [#allocation2], 19
        %294 = vst.msk [vmem:[%s293] ss:$8 sm:$0x3] %vm170, %v287
        %295 = vst.msk [vmem:[%s293] ss:$8 sm:$0x0] %vm170, %v287
        %s296 = scalar_lea.vmem [#allocation2], 35
        %297 = vst.msk [vmem:[%s296] ss:$8 sm:$0x3] %vm170, %v288
        %298 = vst.msk [vmem:[%s296] ss:$8 sm:$0x0] %vm170, %v288
        %s299 = scalar_lea.vmem [#allocation2], 51
        %300 = vst.msk [vmem:[%s299] ss:$8 sm:$0x3] %vm170, %v289
        %301 = vst.msk [vmem:[%s299] ss:$8 sm:$0x0] %vm170, %v289
        %v302 = vld [vmem:[%s278] ss:$8 sm:$0x3]
        %v303 = vld [vmem:[%s280] ss:$8 sm:$0x3]
        %v304 = vld [vmem:[%s282] ss:$8 sm:$0x3]
        %v305 = vld [vmem:[%s284] ss:$8 sm:$0x3]
        %s306 = scalar_lea.vmem %s145, 16
        %v307 = vld [vmem:[%s306] ss:$8 sm:$0x3]
        %s308 = scalar_lea.vmem %s145, 48
        %v309 = vld [vmem:[%s308] ss:$8 sm:$0x3]
        %s310 = scalar_lea.vmem %s145, 80
        %v311 = vld [vmem:[%s310] ss:$8 sm:$0x3]
        %s312 = scalar_lea.vmem %s145, 112
        %v313 = vld [vmem:[%s312] ss:$8 sm:$0x3]
        %v314 = vadd.f32 %v302, %v307
        %v315 = vadd.f32 %v303, %v309
        %v316 = vadd.f32 %v304, %v311
        %v317 = vadd.f32 %v305, %v313
        %s318 = scalar_lea.vmem %s145, 17
        %v319 = vld [vmem:[%s318] ss:$8 sm:$0x3]
        %s320 = scalar_lea.vmem %s145, 49
        %v321 = vld [vmem:[%s320] ss:$8 sm:$0x3]
        %s322 = scalar_lea.vmem %s145, 81
        %v323 = vld [vmem:[%s322] ss:$8 sm:$0x3]
        %s324 = scalar_lea.vmem %s145, 113
        %v325 = vld [vmem:[%s324] ss:$8 sm:$0x3]
        %v326 = vadd.f32 %v314, %v319
        %v327 = vadd.f32 %v315, %v321
        %v328 = vadd.f32 %v316, %v323
        %v329 = vadd.f32 %v317, %v325
        %s330 = scalar_lea.vmem [#allocation2], 4
        %331 = vst.msk [vmem:[%s330] ss:$8 sm:$0x3] %vm170, %v326
        %332 = vst.msk [vmem:[%s330] ss:$8 sm:$0x0] %vm170, %v326
        %s333 = scalar_lea.vmem [#allocation2], 20
        %334 = vst.msk [vmem:[%s333] ss:$8 sm:$0x3] %vm170, %v327
        %335 = vst.msk [vmem:[%s333] ss:$8 sm:$0x0] %vm170, %v327
        %s336 = scalar_lea.vmem [#allocation2], 36
        %337 = vst.msk [vmem:[%s336] ss:$8 sm:$0x3] %vm170, %v328
        %338 = vst.msk [vmem:[%s336] ss:$8 sm:$0x0] %vm170, %v328
        %s339 = scalar_lea.vmem [#allocation2], 52
        %340 = vst.msk [vmem:[%s339] ss:$8 sm:$0x3] %vm170, %v329
        %341 = vst.msk [vmem:[%s339] ss:$8 sm:$0x0] %vm170, %v329
        %v342 = vld [vmem:[%s318] ss:$8 sm:$0x3]
        %v343 = vld [vmem:[%s320] ss:$8 sm:$0x3]
        %v344 = vld [vmem:[%s322] ss:$8 sm:$0x3]
        %v345 = vld [vmem:[%s324] ss:$8 sm:$0x3]
        %s346 = scalar_lea.vmem %s145, 18
        %v347 = vld [vmem:[%s346] ss:$8 sm:$0x3]
        %s348 = scalar_lea.vmem %s145, 50
        %v349 = vld [vmem:[%s348] ss:$8 sm:$0x3]
        %s350 = scalar_lea.vmem %s145, 82
        %v351 = vld [vmem:[%s350] ss:$8 sm:$0x3]
        %s352 = scalar_lea.vmem %s145, 114
        %v353 = vld [vmem:[%s352] ss:$8 sm:$0x3]
        %v354 = vadd.f32 %v342, %v347
        %v355 = vadd.f32 %v343, %v349
        %v356 = vadd.f32 %v344, %v351
        %v357 = vadd.f32 %v345, %v353
        %s358 = scalar_lea.vmem %s145, 19
        %v359 = vld [vmem:[%s358] ss:$8 sm:$0x3]
        %s360 = scalar_lea.vmem %s145, 51
        %v361 = vld [vmem:[%s360] ss:$8 sm:$0x3]
        %s362 = scalar_lea.vmem %s145, 83
        %v363 = vld [vmem:[%s362] ss:$8 sm:$0x3]
        %s364 = scalar_lea.vmem %s145, 115
        %v365 = vld [vmem:[%s364] ss:$8 sm:$0x3]
        %v366 = vadd.f32 %v354, %v359
        %v367 = vadd.f32 %v355, %v361
        %v368 = vadd.f32 %v356, %v363
        %v369 = vadd.f32 %v357, %v365
        %s370 = scalar_lea.vmem [#allocation2], 5
        %371 = vst.msk [vmem:[%s370] ss:$8 sm:$0x3] %vm170, %v366
        %372 = vst.msk [vmem:[%s370] ss:$8 sm:$0x0] %vm170, %v366
        %s373 = scalar_lea.vmem [#allocation2], 21
        %374 = vst.msk [vmem:[%s373] ss:$8 sm:$0x3] %vm170, %v367
        %375 = vst.msk [vmem:[%s373] ss:$8 sm:$0x0] %vm170, %v367
        %s376 = scalar_lea.vmem [#allocation2], 37
        %377 = vst.msk [vmem:[%s376] ss:$8 sm:$0x3] %vm170, %v368
        %378 = vst.msk [vmem:[%s376] ss:$8 sm:$0x0] %vm170, %v368
        %s379 = scalar_lea.vmem [#allocation2], 53
        %380 = vst.msk [vmem:[%s379] ss:$8 sm:$0x3] %vm170, %v369
        %381 = vst.msk [vmem:[%s379] ss:$8 sm:$0x0] %vm170, %v369
        %v382 = vld [vmem:[%s358] ss:$8 sm:$0x3]
        %v383 = vld [vmem:[%s360] ss:$8 sm:$0x3]
        %v384 = vld [vmem:[%s362] ss:$8 sm:$0x3]
        %v385 = vld [vmem:[%s364] ss:$8 sm:$0x3]
        %s386 = scalar_lea.vmem %s145, 20
        %v387 = vld [vmem:[%s386] ss:$8 sm:$0x3]
        %s388 = scalar_lea.vmem %s145, 52
        %v389 = vld [vmem:[%s388] ss:$8 sm:$0x3]
        %s390 = scalar_lea.vmem %s145, 84
        %v391 = vld [vmem:[%s390] ss:$8 sm:$0x3]
        %s392 = scalar_lea.vmem %s145, 116
        %v393 = vld [vmem:[%s392] ss:$8 sm:$0x3]
        %v394 = vadd.f32 %v382, %v387
        %v395 = vadd.f32 %v383, %v389
        %v396 = vadd.f32 %v384, %v391
        %v397 = vadd.f32 %v385, %v393
        %s398 = scalar_lea.vmem %s145, 21
        %v399 = vld [vmem:[%s398] ss:$8 sm:$0x3]
        %s400 = scalar_lea.vmem %s145, 53
        %v401 = vld [vmem:[%s400] ss:$8 sm:$0x3]
        %s402 = scalar_lea.vmem %s145, 85
        %v403 = vld [vmem:[%s402] ss:$8 sm:$0x3]
        %s404 = scalar_lea.vmem %s145, 117
        %v405 = vld [vmem:[%s404] ss:$8 sm:$0x3]
        %v406 = vadd.f32 %v394, %v399
        %v407 = vadd.f32 %v395, %v401
        %v408 = vadd.f32 %v396, %v403
        %v409 = vadd.f32 %v397, %v405
        %s410 = scalar_lea.vmem [#allocation2], 6
        %411 = vst.msk [vmem:[%s410] ss:$8 sm:$0x3] %vm170, %v406
        %412 = vst.msk [vmem:[%s410] ss:$8 sm:$0x0] %vm170, %v406
        %s413 = scalar_lea.vmem [#allocation2], 22
        %414 = vst.msk [vmem:[%s413] ss:$8 sm:$0x3] %vm170, %v407
        %415 = vst.msk [vmem:[%s413] ss:$8 sm:$0x0] %vm170, %v407
        %s416 = scalar_lea.vmem [#allocation2], 38
        %417 = vst.msk [vmem:[%s416] ss:$8 sm:$0x3] %vm170, %v408
        %418 = vst.msk [vmem:[%s416] ss:$8 sm:$0x0] %vm170, %v408
        %s419 = scalar_lea.vmem [#allocation2], 54
        %420 = vst.msk [vmem:[%s419] ss:$8 sm:$0x3] %vm170, %v409
        %421 = vst.msk [vmem:[%s419] ss:$8 sm:$0x0] %vm170, %v409
        %v422 = vld [vmem:[%s398] ss:$8 sm:$0x3]
        %v423 = vld [vmem:[%s400] ss:$8 sm:$0x3]
        %v424 = vld [vmem:[%s402] ss:$8 sm:$0x3]
        %v425 = vld [vmem:[%s404] ss:$8 sm:$0x3]
        %s426 = scalar_lea.vmem %s145, 22
        %v427 = vld [vmem:[%s426] ss:$8 sm:$0x3]
        %s428 = scalar_lea.vmem %s145, 54
        %v429 = vld [vmem:[%s428] ss:$8 sm:$0x3]
        %s430 = scalar_lea.vmem %s145, 86
        %v431 = vld [vmem:[%s430] ss:$8 sm:$0x3]
        %s432 = scalar_lea.vmem %s145, 118
        %v433 = vld [vmem:[%s432] ss:$8 sm:$0x3]
        %v434 = vadd.f32 %v422, %v427
        %v435 = vadd.f32 %v423, %v429
        %v436 = vadd.f32 %v424, %v431
        %v437 = vadd.f32 %v425, %v433
        %s438 = scalar_lea.vmem %s145, 23
        %v439 = vld [vmem:[%s438] ss:$8 sm:$0x3]
        %s440 = scalar_lea.vmem %s145, 55
        %v441 = vld [vmem:[%s440] ss:$8 sm:$0x3]
        %s442 = scalar_lea.vmem %s145, 87
        %v443 = vld [vmem:[%s442] ss:$8 sm:$0x3]
        %s444 = scalar_lea.vmem %s145, 119
        %v445 = vld [vmem:[%s444] ss:$8 sm:$0x3]
        %v446 = vadd.f32 %v434, %v439
        %v447 = vadd.f32 %v435, %v441
        %v448 = vadd.f32 %v436, %v443
        %v449 = vadd.f32 %v437, %v445
        %s450 = scalar_lea.vmem [#allocation2], 7
        %451 = vst.msk [vmem:[%s450] ss:$8 sm:$0x3] %vm170, %v446
        %452 = vst.msk [vmem:[%s450] ss:$8 sm:$0x0] %vm170, %v446
        %s453 = scalar_lea.vmem [#allocation2], 23
        %454 = vst.msk [vmem:[%s453] ss:$8 sm:$0x3] %vm170, %v447
        %455 = vst.msk [vmem:[%s453] ss:$8 sm:$0x0] %vm170, %v447
        %s456 = scalar_lea.vmem [#allocation2], 39
        %457 = vst.msk [vmem:[%s456] ss:$8 sm:$0x3] %vm170, %v448
        %458 = vst.msk [vmem:[%s456] ss:$8 sm:$0x0] %vm170, %v448
        %s459 = scalar_lea.vmem [#allocation2], 55
        %460 = vst.msk [vmem:[%s459] ss:$8 sm:$0x3] %vm170, %v449
        %461 = vst.msk [vmem:[%s459] ss:$8 sm:$0x0] %vm170, %v449
        %v462 = vld [vmem:[#allocation2] sm:$0xff]
        %v463 = vld [vmem:[#allocation2 + $0x8] sm:$0xff]
        %v464 = vld [vmem:[#allocation2 + $0x10] sm:$0xff]
        %v465 = vld [vmem:[#allocation2 + $0x18] sm:$0xff]
        %v466 = vld [vmem:[#allocation2 + $0x20] sm:$0xff]
        %v467 = vld [vmem:[#allocation2 + $0x28] sm:$0xff]
        %v468 = vld [vmem:[#allocation2 + $0x30] sm:$0xff]
        %v469 = vld [vmem:[#allocation2 + $0x38] sm:$0xff]
        %v470 = vld [vmem:[%s1] sm:$0xff]
        %v471 = vld [vmem:[%s1 + $0x8] sm:$0xff]
        %v472 = vld [vmem:[%s1 + $0x10] sm:$0xff]
        %v473 = vld [vmem:[%s1 + $0x18] sm:$0xff]
        %v474 = vld [vmem:[%s1 + $0x20] sm:$0xff]
        %v475 = vld [vmem:[%s1 + $0x28] sm:$0xff]
        %v476 = vld [vmem:[%s1 + $0x30] sm:$0xff]
        %v477 = vld [vmem:[%s1 + $0x38] sm:$0xff]
        %v478 = vld [vmem:[%s1 + $0x40] sm:$0xff]
        %v479 = vld [vmem:[%s1 + $0x48] sm:$0xff]
        %v480 = vld [vmem:[%s1 + $0x50] sm:$0xff]
        %v481 = vld [vmem:[%s1 + $0x58] sm:$0xff]
        %v482 = vld [vmem:[%s1 + $0x60] sm:$0xff]
        %v483 = vld [vmem:[%s1 + $0x68] sm:$0xff]
        %v484 = vld [vmem:[%s1 + $0x70] sm:$0xff]
        %v485 = vld [vmem:[%s1 + $0x78] sm:$0xff]
        %v486 = vld [vmem:[%s1 + $0x80] sm:$0xff]
        %v487 = vld [vmem:[%s1 + $0x88] sm:$0xff]
        %v488 = vld [vmem:[%s1 + $0x90] sm:$0xff]
        %v489 = vld [vmem:[%s1 + $0x98] sm:$0xff]
        %v490 = vld [vmem:[%s1 + $0xa0] sm:$0xff]
        %v491 = vld [vmem:[%s1 + $0xa8] sm:$0xff]
        %v492 = vld [vmem:[%s1 + $0xb0] sm:$0xff]
        %v493 = vld [vmem:[%s1 + $0xb8] sm:$0xff]
        %v494 = vld [vmem:[%s1 + $0xc0] sm:$0xff]
        %v495 = vld [vmem:[%s1 + $0xc8] sm:$0xff]
        %v496 = vld [vmem:[%s1 + $0xd0] sm:$0xff]
        %v497 = vld [vmem:[%s1 + $0xd8] sm:$0xff]
        %v498 = vld [vmem:[%s1 + $0xe0] sm:$0xff]
        %v499 = vld [vmem:[%s1 + $0xe8] sm:$0xff]
        %v500 = vld [vmem:[%s1 + $0xf0] sm:$0xff]
        %v501 = vld [vmem:[%s1 + $0xf8] sm:$0xff]
        %502 = vmatprep.subr.mxu0 0.0
        %503 = vmatpush1.msra.mxu0 %v470
        %504 = vmatprep.subr.mxu0 0.0
        %505 = vmatpush1.msra.mxu0 %v471
        %506 = vmatprep.subr.mxu0 0.0
        %507 = vmatpush1.msra.mxu0 %v472
        %508 = vmatprep.subr.mxu0 0.0
        %509 = vmatpush1.msra.mxu0 %v473
        %510 = vmatprep.subr.mxu0 0.0
        %511 = vmatpush1.msra.mxu0 %v474
        %512 = vmatprep.subr.mxu0 0.0
        %513 = vmatpush1.msra.mxu0 %v475
        %514 = vmatprep.subr.mxu0 0.0
        %515 = vmatpush1.msra.mxu0 %v476
        %516 = vmatprep.subr.mxu0 0.0
        %517 = vmatpush1.msra.mxu0 %v477
        %518 = vmatprep.subr.mxu0 0.0
        %519 = vmatpush1.msra.mxu0 %v478
        %520 = vmatprep.subr.mxu0 0.0
        %521 = vmatpush1.msra.mxu0 %v479
        %522 = vmatprep.subr.mxu0 0.0
        %523 = vmatpush1.msra.mxu0 %v480
        %524 = vmatprep.subr.mxu0 0.0
        %525 = vmatpush1.msra.mxu0 %v481
        %526 = vmatprep.subr.mxu0 0.0
        %527 = vmatpush1.msra.mxu0 %v482
        %528 = vmatprep.subr.mxu0 0.0
        %529 = vmatpush1.msra.mxu0 %v483
        %530 = vmatprep.subr.mxu0 0.0
        %531 = vmatpush1.msra.mxu0 %v484
        %532 = vmatprep.subr.mxu0 0.0
        %533 = vmatpush1.msra.mxu0 %v485
        %534 = vmatprep.subr.mxu0 0.0
        %535 = vmatpush1.msra.mxu0 %v486
        %536 = vmatprep.subr.mxu0 0.0
        %537 = vmatpush1.msra.mxu0 %v487
        %538 = vmatprep.subr.mxu0 0.0
        %539 = vmatpush1.msra.mxu0 %v488
        %540 = vmatprep.subr.mxu0 0.0
        %541 = vmatpush1.msra.mxu0 %v489
        %542 = vmatprep.subr.mxu0 0.0
        %543 = vmatpush1.msra.mxu0 %v490
        %544 = vmatprep.subr.mxu0 0.0
        %545 = vmatpush1.msra.mxu0 %v491
        %546 = vmatprep.subr.mxu0 0.0
        %547 = vmatpush1.msra.mxu0 %v492
        %548 = vmatprep.subr.mxu0 0.0
        %549 = vmatpush1.msra.mxu0 %v493
        %550 = vmatprep.subr.mxu0 0.0
        %551 = vmatpush1.msra.mxu0 %v494
        %552 = vmatprep.subr.mxu0 0.0
        %553 = vmatpush1.msra.mxu0 %v495
        %554 = vmatprep.subr.mxu0 0.0
        %555 = vmatpush1.msra.mxu0 %v496
        %556 = vmatprep.subr.mxu0 0.0
        %557 = vmatpush1.msra.mxu0 %v497
        %558 = vmatprep.subr.mxu0 0.0
        %559 = vmatpush1.msra.mxu0 %v498
        %560 = vmatprep.subr.mxu0 0.0
        %561 = vmatpush1.msra.mxu0 %v499
        %562 = vmatprep.subr.mxu0 0.0
        %563 = vmatpush1.msra.mxu0 %v500
        %564 = vmatprep.subr.mxu0 0.0
        %565 = vmatpush1.msra.mxu0 %v501
        %566 = vmatprep.mubr.f32.mxu0 %v463
        %567 = vmatmul.mubr.f32.gmra.mrb[0].mxu0 %v462
        %v568 = vpop.f32.mrb[0].mxu0
        %v569 = vadd.f32 0.0, %v568
        %v570 = vpop.f32.mrb[0].mxu0
        %571 = vmatprep.mubr.f32.mxu0 %v465
        %572 = vmatmul.mubr.f32.gmra.mrb[0].mxu0 %v464
        %v573 = vpop.f32.mrb[0].mxu0
        %v574 = vadd.f32 0.0, %v573
        %v575 = vpop.f32.mrb[0].mxu0
        %576 = vmatprep.mubr.f32.mxu0 %v467
        %577 = vmatmul.mubr.f32.gmra.mrb[0].mxu0 %v466
        %v578 = vpop.f32.mrb[0].mxu0
        %v579 = vadd.f32 0.0, %v578
        %v580 = vpop.f32.mrb[0].mxu0
        %581 = vmatprep.mubr.f32.mxu0 %v469
        %582 = vmatmul.mubr.f32.gmra.mrb[0].mxu0 %v468
        %v583 = vpop.f32.mrb[0].mxu0
        %v584 = vadd.f32 0.0, %v583
        %v585 = vpop.f32.mrb[0].mxu0
        %586 = vdwg.mxu0
        %vm587 = vcmask 523264
        %588 = vst.msk [vmem:[%s139] sm:$0xff] %vm587, %v569
        %589 = vst.msk [vmem:[%s139 + $0x8] sm:$0xff] %vm587, %v574
        %590 = vst.msk [vmem:[%s139 + $0x10] sm:$0xff] %vm587, %v579
        %591 = vst.msk [vmem:[%s139 + $0x18] sm:$0xff] %vm587, %v584
        %s592 = sand.u32 %s71, 1
        %s593 = scalar_lea.sflag [#allocation4], %s592
        %s594 = sand.u32 %s71, 1
        %s595 = smul.addr %s594, 32
        %s596 = scalar_lea.vmem [#allocation3], %s595
        // Predicated region
        $region29: #{tpu_custom_call.1} parent=27 // pred_check
          %p597 = pneg %p81
        $region30: #{tpu_custom_call.1} parent=27 // pred_check_branch
          %599 = sbr.rel (%p597) target = $region32
        $region31: #{tpu_custom_call.1} parent=27 // pred_region
          %s600 = smul.u32 4, %s16
          %s602 = ssub.s32 512, 512
          %603 = vsyncadd %s593, %s602
          %s604 = smul.addr %s600, 128
          %s605 = scalar_lea.hbm %s2, %s604
          %s606 = sshll.u32 %s596, 4
          %s607 = int_to_ptr.vmem [resolvable:$true] %s606
          %612 = dma.vmem_to_hbm [thread:$0]  %s607, 512, %s605, %s593, 128, 128, 8
        $region32: #{tpu_custom_call.1} parent=27 // pred_fallthru
          _
      $region28: #{tpu_custom_call.1} parent=5 // pred_fallthru
        _
      %p613 = scmp.le.s32.totalorder 2, %s11
      // Predicated region
      $region33: #{tpu_custom_call.1} parent=5 // pred_check
        %p614 = pneg %p613
      $region34: #{tpu_custom_call.1} parent=5 // pred_check_branch
        %616 = sbr.rel (%p614) target = $region36
      $region35: #{tpu_custom_call.1} parent=5 // pred_region
        %s617 = ssub.s32 %s11, 2
        // Predicated region
        $region37: #{tpu_custom_call.1} parent=35 // pred_check
          %p618 = pneg %p87
        $region38: #{tpu_custom_call.1} parent=35 // pred_check_branch
          %620 = sbr.rel (%p618) target = $region40
        $region39: #{tpu_custom_call.1} parent=35 // pred_region
          %s621 = sand.u32 %s72, 1
          %s622 = scalar_lea.sflag [#allocation4], %s621
          %s623 = sand.u32 %s72, 1
          %s624 = smul.addr %s623, 32
          %s625 = scalar_lea.vmem [#allocation3], %s624
          %626 = dma.done %s622, 512
        $region40: #{tpu_custom_call.1} parent=35 // pred_fallthru
          _
      $region36: #{tpu_custom_call.1} parent=5 // pred_fallthru
        _
    $region6: #{tpu_custom_call.1} parent=1 // loop_footer
      %s15 = sadd.s32 1, %s11
    $region7: #{tpu_custom_call.1} parent=1 // loop_footer_branch
      %10 = sbr.rel target = $region3
    $region8: #{tpu_custom_call.1} parent=1 // loop_exit
      _
    %627 = vsyncpa [#allocation4], 1
    %s628 = scalar_lea.sflag [#allocation4], 1
    %629 = vsyncpa %s628, 1

</llo_original>
